<compile_context>
chip_gen: v5e
topology: v5e:2x2
jax: 0.10.0
libtpu: 0.0.40
codegen_flags: <defaults>
</compile_context>

<pallas_src>
import functools

import jax
import jax.numpy as jnp
from jax.experimental import pallas as pl
from jax.experimental.pallas import tpu as pltpu


def _soft_dice_kernel(logits_ref, labels_ref, out_ref, *,
                      p, block_rows, n_tiles, tiles_per_part, needs_gate):
    i = pl.program_id(1)          # tile index within a part ("arbitrary" axis)

    @pl.when(i == 0)
    def _init():
        out_ref[...] = jnp.zeros_like(out_ref)

    def _accumulate():
        x = logits_ref[...].astype(jnp.float32)
        y = labels_ref[...].astype(jnp.float32)

        probs = jax.nn.sigmoid(x)
        if p == 1:
            pp, yp = probs, y
        elif p == 2:                       # plain VPU muls, keep EUP free
            pp, yp = probs * probs, y * y
        else:                              # integer p -> repeated muls
            pp, yp = probs ** p, y ** p

        numer_c = probs * y                # padded elems: 0 * 0 = 0
        denor_c = pp + yp                  # padded elems: 0 + 0 = 0

        # Fold the tile into lane-dense (8,128) accumulators: pure vreg adds,
        # no per-element masks, no XLU work in the hot path.
        g = block_rows // 8
        tile_acc = jnp.stack(
            [jnp.sum(numer_c.reshape(g, 8, 128), axis=0),
             jnp.sum(denor_c.reshape(g, 8, 128), axis=0)])   # (2, 8, 128)
        out_ref[...] += tile_acc[None]

    if needs_gate:
        # Gate only whole out-of-range (clamped, duplicate) tiles -- a single
        # scalar compare per grid step.
        c = pl.program_id(0)
        pl.when(c * tiles_per_part + i < n_tiles)(_accumulate)
    else:
        _accumulate()


def _sublane_align(*dtypes):
    """Sublane multiple needed for the narrowest input dtype (8/16/32)."""
    a = 8
    for dt in dtypes:
        isz = jnp.dtype(dt).itemsize
        a = max(a, 32 // max(1, min(isz, 4)))
    return a


def soft_dice_loss_v1(logits, labels, *, p=1, smooth=1.0,
                      block_rows=4096, num_parts=1):
    """Pallas TPU implementation of SoftDiceLossV1.forward. Returns a scalar f32.

    num_parts: 1 for single-TensorCore chips (v5e, v6e), 2 for v7x (2 TCs).
    Call-site tip: keep logits in bf16 and labels in int8/bool upstream; the
    kernel streams them as-is (biggest lever for an HBM-bound reduction).
    """
    assert logits.shape == labels.shape
    lanes = 128
    total = int(logits.size)
    assert total > 0

    if labels.dtype == jnp.bool_:
        labels = labels.astype(jnp.int8)
    if not jnp.issubdtype(logits.dtype, jnp.floating):
        logits = logits.astype(jnp.float32)

    flat_l = logits.reshape(-1)
    flat_y = labels.reshape(-1)

    align = _sublane_align(flat_l.dtype, flat_y.dtype)

    # Effective tile height: multiple of `align`, clamped to the data size.
    block_rows = max(align, (int(block_rows) // align) * align)
    rows_min = pl.cdiv(total, lanes)
    block_rows = min(block_rows, pl.cdiv(rows_min, align) * align)

    n_tiles = pl.cdiv(rows_min, block_rows)
    rows = n_tiles * block_rows
    pad = rows * lanes - total
    if pad:
        # Neutral padding: sigmoid(-1e4) == 0 exactly in f32 and labels pad to
        # 0, so padded elements contribute nothing to numer or denor -> no
        # per-element masking anywhere in the kernel.
        flat_l = jnp.pad(flat_l, (0, pad),
                         constant_values=jnp.asarray(-1e4, flat_l.dtype))
        flat_y = jnp.pad(flat_y, (0, pad))

    L = flat_l.reshape(rows, lanes)
    Y = flat_y.reshape(rows, lanes)

    num_parts = max(1, min(int(num_parts), n_tiles))
    tiles_per_part = pl.cdiv(n_tiles, num_parts)
    needs_gate = (num_parts * tiles_per_part) != n_tiles

    if needs_gate:
        # Clamp so logical tiles past the end re-read the last real tile; the
        # kernel gates their duplicate contribution with a scalar pl.when.
        def in_map(c, i):
            return (jnp.minimum(c * tiles_per_part + i, n_tiles - 1), 0)
    else:
        def in_map(c, i):
            return (c * tiles_per_part + i, 0)

    kernel = functools.partial(
        _soft_dice_kernel, p=p, block_rows=block_rows, n_tiles=n_tiles,
        tiles_per_part=tiles_per_part, needs_gate=needs_gate)

    # Lane-dense partials: one (2, 8, 128) f32 accumulator per part.
    partials = pl.pallas_call(
        kernel,
        out_shape=jax.ShapeDtypeStruct((num_parts, 2, 8, lanes), jnp.float32),
        grid_spec=pltpu.PrefetchScalarGridSpec(
            num_scalar_prefetch=0,
            grid=(num_parts, tiles_per_part),
            in_specs=[
                pl.BlockSpec((block_rows, lanes), in_map),
                pl.BlockSpec((block_rows, lanes), in_map),
            ],
            out_specs=pl.BlockSpec((1, 2, 8, lanes),
                                   lambda c, i: (c, 0, 0, 0)),
        ),
        compiler_params=pltpu.CompilerParams(
            dimension_semantics=("parallel", "arbitrary"),
            vmem_limit_bytes=48 * 1024 * 1024,
        ),
    )(L, Y)

    # Tiny finalize outside the kernel: cross-lane reduce of the partials.
    numer = jnp.sum(partials[:, 0])
    denor = jnp.sum(partials[:, 1])
    return 1.0 - (2.0 * numer + smooth) / (denor + smooth)


def _reference(logits, labels, p=1, smooth=1.0):
    probs = jax.nn.sigmoid(logits.astype(jnp.float32))
    labels = labels.astype(jnp.float32)
    numer = jnp.sum(probs * labels)
    denor = jnp.sum(probs ** p + labels ** p)
    return 1.0 - (2.0 * numer + smooth) / (denor + smooth)


if __name__ == "__main__":
    key = jax.random.PRNGKey(0)
    k1, k2, k3, k4 = jax.random.split(key, 4)

    # Test 1: basic f32, p=1 -- logits (N, H, W) as in the module docstring.
    N, H, W = 2, 16, 16
    logits = jax.random.normal(k1, (N, H, W), dtype=jnp.float32)
    labels = (jax.random.uniform(k2, (N, H, W)) > 0.5).astype(jnp.float32)
    loss = jax.block_until_ready(soft_dice_loss_v1(logits, labels, p=1, smooth=1.0))
    ref = _reference(logits, labels, p=1, smooth=1.0)
    assert jnp.allclose(loss, ref, atol=1e-4, rtol=1e-4), (loss, ref)

    # Test 2: bf16 logits / bool labels, p=2, ragged size (exercises padding).
    shape2 = (2, 3, 50)
    logits2 = jax.random.normal(k3, shape2, dtype=jnp.bfloat16)
    labels2 = jax.random.uniform(k4, shape2) > 0.5
    loss2 = jax.block_until_ready(soft_dice_loss_v1(logits2, labels2, p=2, smooth=1.0))
    ref2 = _reference(logits2, labels2, p=2, smooth=1.0)
    assert jnp.allclose(loss2, ref2, atol=1e-4, rtol=1e-4), (loss2, ref2)

    # Test 3: multi-part grid (v7x-style) with a clamped, gated tail tile.
    shape3 = (3, 40, 40)
    logits3 = jax.random.normal(k1, shape3, dtype=jnp.float32)
    labels3 = (jax.random.uniform(k2, shape3) > 0.5).astype(jnp.float32)
    loss3 = jax.block_until_ready(
        soft_dice_loss_v1(logits3, labels3, p=1, smooth=1.0,
                          block_rows=8, num_parts=2))
    ref3 = _reference(logits3, labels3, p=1, smooth=1.0)
    assert jnp.allclose(loss3, ref3, atol=1e-4, rtol=1e-4), (loss3, ref3)

    print("KERNEL_OK")
</pallas_src>

<mosaic_0001>
module attributes {stable_mosaic.version = 11 : i64} {
  func.func @_soft_dice_kernel(%arg0: i32, %arg1: i32, %arg2: memref<8x128xf32, #tpu.memory_space<vmem>>, %arg3: memref<8x128xf32, #tpu.memory_space<vmem>>, %arg4: memref<1x2x8x128xf32, #tpu.memory_space<vmem>>) attributes {dimension_semantics = [#tpu.dimension_semantics<parallel>, #tpu.dimension_semantics<arbitrary>], iteration_bounds = array<i64: 1, 1>, scalar_prefetch = 0 : i64, scratch_operands = 0 : i64, tpu.core_type = #tpu.core_type<tc>, window_params = [{transform_indices = @transform_0, window_bounds = array<i64: 8, 128>}, {transform_indices = @transform_1, window_bounds = array<i64: 8, 128>}, {transform_indices = @transform_2, window_bounds = array<i64: 1, 2, 8, 128>}]} {
    %c0_i32 = arith.constant 0 : i32
    %0 = arith.cmpi eq, %arg1, %c0_i32 : i32
    %1 = arith.extui %0 : i1 to i32
    %c0_i32_0 = arith.constant 0 : i32
    %2 = arith.cmpi ne, %1, %c0_i32_0 : i32
    scf.if %2 {
      %cst_14 = arith.constant 0.000000e+00 : f32
      %23 = vector.broadcast %cst_14 : f32 to vector<1x2x8x128xf32>
      %c0_15 = arith.constant 0 : index
      %c0_16 = arith.constant 0 : index
      %c0_17 = arith.constant 0 : index
      %c0_18 = arith.constant 0 : index
      %24 = vector.load %arg4[%c0_15, %c0_16, %c0_17, %c0_18] : memref<1x2x8x128xf32, #tpu.memory_space<vmem>>, vector<1x2x8x128xf32>
      tpu.vector_store %arg4[%c0_15, %c0_16, %c0_17, %c0_18], %23 {strides = array<i32>} : memref<1x2x8x128xf32, #tpu.memory_space<vmem>>, vector<1x2x8x128xf32>,
    } else {
    }
    %c0 = arith.constant 0 : index
    %c0_1 = arith.constant 0 : index
    %3 = vector.load %arg2[%c0, %c0_1] : memref<8x128xf32, #tpu.memory_space<vmem>>, vector<8x128xf32>
    %c0_2 = arith.constant 0 : index
    %c0_3 = arith.constant 0 : index
    %4 = vector.load %arg3[%c0_2, %c0_3] : memref<8x128xf32, #tpu.memory_space<vmem>>, vector<8x128xf32>
    %5 = arith.negf %3 : vector<8x128xf32>
    %6 = math.exp %5 : vector<8x128xf32>
    %cst = arith.constant 1.000000e+00 : f32
    %7 = vector.broadcast %cst : f32 to vector<8x128xf32>
    %8 = arith.addf %7, %6 : vector<8x128xf32>
    %9 = arith.divf %7, %8 : vector<8x128xf32>
    %10 = arith.mulf %9, %4 : vector<8x128xf32>
    %11 = arith.addf %9, %4 : vector<8x128xf32>
    %12 = vector.shape_cast %10 : vector<8x128xf32> to vector<1x8x128xf32>
    %cst_4 = arith.constant dense<0.000000e+00> : vector<8x128xf32>
    %13 = vector.multi_reduction <add>, %12, %cst_4 [0] : vector<1x8x128xf32> to vector<8x128xf32>
    %14 = vector.shape_cast %11 : vector<8x128xf32> to vector<1x8x128xf32>
    %cst_5 = arith.constant dense<0.000000e+00> : vector<8x128xf32>
    %15 = vector.multi_reduction <add>, %14, %cst_5 [0] : vector<1x8x128xf32> to vector<8x128xf32>
    %16 = vector.shape_cast %13 : vector<8x128xf32> to vector<1x8x128xf32>
    %17 = vector.shape_cast %15 : vector<8x128xf32> to vector<1x8x128xf32>
    %18 = tpu.concatenate %16, %17 in 0 : vector<1x8x128xf32>, vector<1x8x128xf32> -> vector<2x8x128xf32>
    %c0_6 = arith.constant 0 : index
    %c0_7 = arith.constant 0 : index
    %c0_8 = arith.constant 0 : index
    %c0_9 = arith.constant 0 : index
    %19 = vector.load %arg4[%c0_6, %c0_7, %c0_8, %c0_9] : memref<1x2x8x128xf32, #tpu.memory_space<vmem>>, vector<1x2x8x128xf32>
    %20 = vector.shape_cast %18 : vector<2x8x128xf32> to vector<1x2x8x128xf32>
    %21 = arith.addf %19, %20 : vector<1x2x8x128xf32>
    %c0_10 = arith.constant 0 : index
    %c0_11 = arith.constant 0 : index
    %c0_12 = arith.constant 0 : index
    %c0_13 = arith.constant 0 : index
    %22 = vector.load %arg4[%c0_10, %c0_11, %c0_12, %c0_13] : memref<1x2x8x128xf32, #tpu.memory_space<vmem>>, vector<1x2x8x128xf32>
    tpu.vector_store %arg4[%c0_10, %c0_11, %c0_12, %c0_13], %21 {strides = array<i32>} : memref<1x2x8x128xf32, #tpu.memory_space<vmem>>, vector<1x2x8x128xf32>,
    return
  }
  func.func @transform_0(%arg0: i32, %arg1: i32) -> (i32, i32) {
    %c1_i32 = arith.constant 1 : i32
    %0 = arith.muli %arg0, %c1_i32 : i32
    %1 = arith.addi %0, %arg1 : i32
    %c0_i32 = arith.constant 0 : i32
    %c0_i32_0 = arith.constant 0 : i32
    return %1, %c0_i32 : i32, i32
  }
  func.func @transform_1(%arg0: i32, %arg1: i32) -> (i32, i32) {
    %c1_i32 = arith.constant 1 : i32
    %0 = arith.muli %arg0, %c1_i32 : i32
    %1 = arith.addi %0, %arg1 : i32
    %c0_i32 = arith.constant 0 : i32
    %c0_i32_0 = arith.constant 0 : i32
    return %1, %c0_i32 : i32, i32
  }
  func.func @transform_2(%arg0: i32, %arg1: i32) -> (i32, i32, i32, i32) {
    %c0_i32 = arith.constant 0 : i32
    %c0_i32_0 = arith.constant 0 : i32
    %c0_i32_1 = arith.constant 0 : i32
    %c0_i32_2 = arith.constant 0 : i32
    return %arg0, %c0_i32, %c0_i32_0, %c0_i32_1 : i32, i32, i32, i32
  }
}

</mosaic_0001>

<llo_original>
// kernel: tpu_custom_call.1
$region0: #{tpu_custom_call.1}
  #allocation0 [shape = 'u32[]', space=smem, size = 0x4, offset = 0x4, fixed_abs, tag = 'smem constant byte address 0x4 - core index']
  #allocation1 [shape = 'u32[72,128]{1,0:T(1,128)}', space=vmem, size = 0x9000, scoped, tag = 'internal scratch']
  %s0 = inlined_call_operand.hbm [shape: f32[8,128], index: 0, kind: input, shape index: {}]
  %s1 = inlined_call_operand.hbm [shape: f32[8,128], index: 1, kind: input, shape index: {}]
  %s2 = inlined_call_operand.hbm [shape: f32[1,2,8,128], index: 2, kind: output, shape index: {}]
  %s3 = sld [smem:[#allocation0]]
  $region30: #{tpu_custom_call.1} parent=0
    _
  %s5 = ssub.s32 1, %s3
  %s6 = scalar_select 0, %s5, %s3
  $region1: #{tpu_custom_call.1} parent=0
    #allocation2 [shape = 'u8[4096]{0}', space=vmem, size = 0x1000, scoped, tag = 'input window, operand 0, single buffered']
    #allocation3 [shape = 's32[1]{0}', space=sflag, size = 0x4, scoped, tag = 'scoped memory for tpu_custom_call.1']
    #allocation4 [shape = 's32[1]{0}', space=sflag, size = 0x4, scoped, tag = 'scoped memory for tpu_custom_call.1']
    #allocation5 [shape = 'u8[4096]{0}', space=vmem, size = 0x1000, scoped, tag = 'input window, operand 1, single buffered']
    #allocation6 [shape = 's32[1]{0}', space=sflag, size = 0x4, scoped, tag = 'scoped memory for tpu_custom_call.1']
    #allocation7 [shape = 'u8[8192]{0}', space=vmem, size = 0x2000, scoped, tag = 'output window, operand 0, single buffered']
    %7 = vsyncpa [#allocation3], 0
    %8 = vsyncpa [#allocation6], 0
    %9 = vsyncpa [#allocation4], 0
    // Predicated region
    $region2: #{tpu_custom_call.1} parent=1 // pred_check
      _
    $region3: #{tpu_custom_call.1} parent=1 // pred_check_branch
      %11 = sbr.rel (0) target = $region5
    $region4: #{tpu_custom_call.1} parent=1 // pred_region
      %s12 = sadd.s32 0, 0
      %14 = vsyncadd [#allocation3], 0
      %s15 = smul.addr %s12, 8
      %s16 = scalar_lea.hbm %s0, %s15
      %s18 = sshll.u32 %s16, 4
      %s19 = int_to_ptr.hbm [resolvable:$true] %s18
      %s20 = sshll.u32 [#allocation2], 4
      %s21 = int_to_ptr.vmem [resolvable:$true] %s20
      %23 = dma.hbm_to_vmem [thread:$0]  %s19, 128, %s21, [#allocation3]
    $region5: #{tpu_custom_call.1} parent=1 // pred_fallthru
      _
    // Predicated region
    $region6: #{tpu_custom_call.1} parent=1 // pred_check
      _
    $region7: #{tpu_custom_call.1} parent=1 // pred_check_branch
      %25 = sbr.rel (0) target = $region9
    $region8: #{tpu_custom_call.1} parent=1 // pred_region
      %s26 = sadd.s32 0, 0
      %28 = vsyncadd [#allocation6], 0
      %s29 = smul.addr %s26, 8
      %s30 = scalar_lea.hbm %s1, %s29
      %s32 = sshll.u32 %s30, 4
      %s33 = int_to_ptr.hbm [resolvable:$true] %s32
      %s34 = sshll.u32 [#allocation5], 4
      %s35 = int_to_ptr.vmem [resolvable:$true] %s34
      %37 = dma.hbm_to_vmem [thread:$0]  %s33, 128, %s35, [#allocation6]
    $region9: #{tpu_custom_call.1} parent=1 // pred_fallthru
      _
    // Predicated region
    $region10: #{tpu_custom_call.1} parent=1 // pred_check
      _
    $region11: #{tpu_custom_call.1} parent=1 // pred_check_branch
      %39 = sbr.rel (0) target = $region13
    $region12: #{tpu_custom_call.1} parent=1 // pred_region
      %41 = dma.done [#allocation3], 128
    $region13: #{tpu_custom_call.1} parent=1 // pred_fallthru
      _
    // Predicated region
    $region14: #{tpu_custom_call.1} parent=1 // pred_check
      _
    $region15: #{tpu_custom_call.1} parent=1 // pred_check_branch
      %43 = sbr.rel (0) target = $region17
    $region16: #{tpu_custom_call.1} parent=1 // pred_region
      %45 = dma.done [#allocation6], 128
    $region17: #{tpu_custom_call.1} parent=1 // pred_fallthru
      _
    %s46 = sadd.s32 0, 0
    %s47 = sadd.s32 0, 0
    %p48 = scmp.eq.s32.totalorder 0, 0
    // Predicated region
    $region18: #{tpu_custom_call.1} parent=1 // pred_check
      %p49 = pneg %p48
    $region19: #{tpu_custom_call.1} parent=1 // pred_check_branch
      %51 = sbr.rel (%p49) target = $region21
    $region20: #{tpu_custom_call.1} parent=1 // pred_region
      %52 = vst [vmem:[#allocation7] sm:$0xff] 0.0
      %53 = vst [vmem:[#allocation7 + $0x8] sm:$0xff] 0.0
    $region21: #{tpu_custom_call.1} parent=1 // pred_fallthru
      _
    %v54 = vld [vmem:[#allocation2] sm:$0xff]
    %v55 = vld [vmem:[#allocation5] sm:$0xff]
    %v56 = vxor.u32 %v54, 2147483648
    %v57 = vmul.f32 %v56, 1.442695
    %v58 = vpow.pop %v57
    %v59 = vadd.f32 %v58, 1.0
    %v60 = vrcp.pop %v59
    %v61 = vmul.f32 %v59, %v60
    %v62 = vsub.f32 1.0, %v61
    %v63 = vmul.f32 %v60, %v62
    %v64 = vadd.f32 %v60, %v63
    %vm65 = vweird.f32 %v59
    %vm66 = vweird.f32 %v60
    %vm67 = vmor %vm65, %vm66
    %v68 = vsel %vm67, %v60, %v64
    %v69 = vand.u32 2147483647, %v59
    %vm70 = vcmp.eq.f32.partialorder %v69, 8.507059e+37
    %v71 = vand.u32 %v59, 2147483648
    %v72 = vor.u32 1.1754944e-38, %v71
    %v73 = vsel %vm70, %v72, %v68
    %v74 = vmul.f32 1.0, %v73
    %v75 = vmul.f32 %v74, %v55
    %v76 = vadd.f32 %v74, %v55
    %v77 = vadd.f32 %v75, 0.0
    %v78 = vadd.f32 %v76, 0.0
    %v79 = vld [vmem:[#allocation7] sm:$0xff]
    %v80 = vld [vmem:[#allocation7 + $0x8] sm:$0xff]
    %v81 = vadd.f32 %v79, %v77
    %v82 = vadd.f32 %v80, %v78
    %83 = vst [vmem:[#allocation7] sm:$0xff] %v81
    %84 = vst [vmem:[#allocation7 + $0x8] sm:$0xff] %v82
    // Predicated region
    $region22: #{tpu_custom_call.1} parent=1 // pred_check
      _
    $region23: #{tpu_custom_call.1} parent=1 // pred_check_branch
      %86 = sbr.rel (0) target = $region25
    $region24: #{tpu_custom_call.1} parent=1 // pred_region
      %88 = vsyncadd [#allocation4], 0
      %s89 = sshll.u32 [#allocation7], 4
      %s90 = int_to_ptr.vmem [resolvable:$true] %s89
      %s91 = sshll.u32 %s2, 4
      %s92 = int_to_ptr.hbm [resolvable:$true] %s91
      %97 = dma.vmem_to_hbm [thread:$0]  %s90, 256, %s92, [#allocation4], 128, 128, 8
    $region25: #{tpu_custom_call.1} parent=1 // pred_fallthru
      _
    // Predicated region
    $region26: #{tpu_custom_call.1} parent=1 // pred_check
      _
    $region27: #{tpu_custom_call.1} parent=1 // pred_check_branch
      %99 = sbr.rel (0) target = $region29
    $region28: #{tpu_custom_call.1} parent=1 // pred_region
      %101 = dma.done [#allocation4], 256
    $region29: #{tpu_custom_call.1} parent=1 // pred_fallthru
      _
    %102 = vsyncpa [#allocation3], 1
    %103 = vsyncpa [#allocation6], 1
    %104 = vsyncpa [#allocation4], 1

</llo_original>
